<compile_context>
chip_gen: v7x
topology: tpu7x:2x2x1
jax: 0.10.0
libtpu: 0.0.40
codegen_flags: <defaults>
</compile_context>

<pallas_src>
import functools

import jax
import jax.numpy as jnp
from jax.experimental import pallas as pl
from jax.experimental.pallas import tpu as pltpu


# ---------------------------------------------------------------------------
# Kernel
# ---------------------------------------------------------------------------
def _bn_kernel(x_ref, w_ref, b_ref,                # inputs
               o_ref, mean_ref, var_ref,           # outputs
               sum_ref, sq_ref, scale_ref, shift_ref,   # VMEM scratch
               *, inv_count, eps):
    # grid = (channel_block, pass, spatial_tile)
    p = pl.program_id(1)
    t = pl.program_id(2)
    nt = pl.num_programs(2)

    # ---------------- pass 0: accumulate per-channel sum / sum(x^2) --------
    @pl.when(p == 0)
    def _pass0():
        @pl.when(t == 0)
        def _init():
            sum_ref[...] = jnp.zeros_like(sum_ref)
            sq_ref[...] = jnp.zeros_like(sq_ref)

        x = x_ref[...].astype(jnp.float32)                     # (N, TC, TL)
        # NOTE: axis=(0,2) reduction runs on VPU/XLU; the kernel is DMA-bound
        # so the idle-MXU "ones matmul" trick is not needed here.
        sum_ref[...] += jnp.sum(x, axis=(0, 2), keepdims=True)        # (1,TC,1)
        sq_ref[...] += jnp.sum(x * x, axis=(0, 2), keepdims=True)     # (1,TC,1)

        @pl.when(t == nt - 1)
        def _finalize():
            mean = sum_ref[...] * inv_count
            var = sq_ref[...] * inv_count - mean * mean        # biased variance
            inv_std = jax.lax.rsqrt(var + eps)
            scale = w_ref[...].astype(jnp.float32) * inv_std
            shift = b_ref[...].astype(jnp.float32) - mean * scale
            mean_ref[...] = mean
            var_ref[...] = var
            scale_ref[...] = scale
            shift_ref[...] = shift

    # ---------------- pass 1: y = x * scale + shift -------------------------
    @pl.when(p == 1)
    def _pass1():
        x = x_ref[...].astype(jnp.float32)                     # (N, TC, TL)
        y = x * scale_ref[...] + shift_ref[...]                # broadcast (1,TC,1)
        o_ref[...] = y.astype(o_ref.dtype)


# ---------------------------------------------------------------------------
# Tile-size selection (VMEM-budget aware; safe on v5e/v6e/v7x)
# ---------------------------------------------------------------------------
def _channel_tile(C):
    # Split channels only when it divides cleanly into 8-sublane tiles; this
    # also gives v7x's two TensorCores independent channel blocks.
    for tc in (64, 32, 16, 8):
        if C % tc == 0 and C > tc:
            return tc
    return C  # full-extent escape (e.g. toy C=4)


def _spatial_tile(N, TC, HW, max_block_bytes):
    if HW % 128 != 0:
        # Full-extent escape on the lane axis.
        # TODO(synk): for huge, non-128-divisible H*W a padded/Element-indexed
        # lane tiling would be needed; not required for these shapes.
        return HW
    bytes_per_lane = N * TC * 4                      # f32 working set
    max_tl = max(128, max_block_bytes // bytes_per_lane)
    n128 = HW // 128
    best = 128
    for d in range(1, n128 + 1):
        if n128 % d == 0 and 128 * d <= max_tl:
            best = 128 * d
    return best


# ---------------------------------------------------------------------------
# pallas_call wrapper
# ---------------------------------------------------------------------------
def _bn_pallas(x3, w3, b3, *, eps, max_block_bytes=2 * 1024 * 1024):
    """x3: (N, C, HW) f32;  w3/b3: (1, C, 1).  Returns (y3, mean, var)."""
    N, C, HW = x3.shape
    TC = _channel_tile(C)
    TL = _spatial_tile(N, TC, HW, max_block_bytes)
    n_c = C // TC
    n_t = HW // TL
    grid = (n_c, 2, n_t)

    kernel = functools.partial(_bn_kernel,
                               inv_count=1.0 / float(N * HW),
                               eps=float(eps))

    block_bytes = 4 * N * TC * TL
    # in + out blocks, double-buffered, plus headroom; clamp below v7x's
    # 64 MiB physical VMEM.
    vmem_limit = int(min(48 * 1024 * 1024,
                         max(24 * 1024 * 1024, 8 * block_bytes)))

    return pl.pallas_call(
        kernel,
        out_shape=(
            jax.ShapeDtypeStruct((N, C, HW), x3.dtype),      # normalized out
            jax.ShapeDtypeStruct((1, C, 1), jnp.float32),    # batch mean
            jax.ShapeDtypeStruct((1, C, 1), jnp.float32),    # batch var (biased)
        ),
        grid_spec=pltpu.PrefetchScalarGridSpec(
            num_scalar_prefetch=0,
            grid=grid,
            in_specs=[
                pl.BlockSpec((N, TC, TL), lambda c, p, t: (0, c, t)),
                pl.BlockSpec((1, TC, 1), lambda c, p, t: (0, c, 0)),
                pl.BlockSpec((1, TC, 1), lambda c, p, t: (0, c, 0)),
            ],
            out_specs=(
                # During pass 0 the output block index is pinned to tile 0
                # (t * p == 0), so no garbage is ever written back to HBM;
                # pass 1 walks the tiles and writes each block exactly once.
                pl.BlockSpec((N, TC, TL), lambda c, p, t: (0, c, t * p)),
                pl.BlockSpec((1, TC, 1), lambda c, p, t: (0, c, 0)),
                pl.BlockSpec((1, TC, 1), lambda c, p, t: (0, c, 0)),
            ),
            scratch_shapes=[
                pltpu.VMEM((1, TC, 1), jnp.float32),   # sum
                pltpu.VMEM((1, TC, 1), jnp.float32),   # sum of squares
                pltpu.VMEM((1, TC, 1), jnp.float32),   # scale = w * inv_std
                pltpu.VMEM((1, TC, 1), jnp.float32),   # shift = b - mean*scale
            ],
        ),
        compiler_params=pltpu.CompilerParams(
            dimension_semantics=("parallel", "arbitrary", "arbitrary"),
            vmem_limit_bytes=vmem_limit,
        ),
    )(x3, w3, b3)


# ---------------------------------------------------------------------------
# jitted forward passes (reshape + kernel + running-stat update, fused by XLA)
# ---------------------------------------------------------------------------
def _bn_train_forward(x, weight, bias, running_mean, running_var,
                      num_batches_tracked, *, momentum, eps):
    N, C, H, W = x.shape
    HW = H * W
    x3 = x.reshape(N, C, HW)                 # free view, no transpose
    w3 = weight.reshape(1, C, 1)
    b3 = bias.reshape(1, C, 1)

    y3, mean3, var3 = _bn_pallas(x3, w3, b3, eps=eps)

    y = y3.reshape(N, C, H, W)
    mean_bn = mean3.reshape(1, C, 1, 1)
    var_bn = var3.reshape(1, C, 1, 1)

    if momentum is not None:
        new_rm = (1.0 - momentum) * running_mean + momentum * mean_bn
        new_rv = (1.0 - momentum) * running_var + momentum * var_bn
    else:
        n = (num_batches_tracked + 1).astype(jnp.float32)
        new_rm = running_mean + (mean_bn - running_mean) / n
        new_rv = running_var + (var_bn - running_var) / n
    return y, new_rm, new_rv


def _bn_eval_forward(x, weight, bias, running_mean, running_var, *, eps):
    # Eval mode is a trivial elementwise affine; plain jitted JAX is already
    # optimal (single fused elementwise kernel).
    inv_std = jax.lax.rsqrt(running_var + eps)
    return weight * (x - running_mean) * inv_std + bias


# ---------------------------------------------------------------------------
# Module wrapper (mirrors MyBatchnorm2d)
# ---------------------------------------------------------------------------
class MyBatchnorm2dPallas:
    """JAX/Pallas re-implementation of MyBatchnorm2d."""

    def __init__(self, num_features, momentum=0.1):
        self.num_features = num_features
        self.momentum = momentum
        shape = (1, num_features, 1, 1)
        self.weight = jnp.ones(shape, jnp.float32)
        self.bias = jnp.zeros(shape, jnp.float32)
        self.running_mean = jnp.zeros(shape, jnp.float32)
        self.running_var = jnp.zeros(shape, jnp.float32)
        self.num_batches_tracked = jnp.array(0, jnp.int32)
        self.training = True

        self._train_fn = jax.jit(functools.partial(
            _bn_train_forward, momentum=momentum, eps=1e-5))
        self._eval_fn = jax.jit(functools.partial(_bn_eval_forward, eps=1e-5))

    def train(self):
        self.training = True
        return self

    def eval(self):
        self.training = False
        return self

    def __call__(self, x):
        assert x.shape[1] == self.num_features
        if self.training:
            y, new_rm, new_rv = self._train_fn(
                x, self.weight, self.bias,
                self.running_mean, self.running_var, self.num_batches_tracked)
            self.running_mean = new_rm
            self.running_var = new_rv
            self.num_batches_tracked = self.num_batches_tracked + 1
            return y
        return self._eval_fn(x, self.weight, self.bias,
                             self.running_mean, self.running_var)


# ---------------------------------------------------------------------------
# Pure-JAX reference (mirrors the PyTorch training-mode forward)
# ---------------------------------------------------------------------------
def _reference(x, weight, bias, eps=1e-5):
    mean_bn = x.mean(axis=0, keepdims=True).mean(axis=2, keepdims=True).mean(
        axis=3, keepdims=True)
    var_bn = ((x - mean_bn) ** 2).mean(axis=0, keepdims=True).mean(
        axis=2, keepdims=True).mean(axis=3, keepdims=True)
    x_norm = (x - mean_bn) / jnp.sqrt(var_bn + eps)
    return weight * x_norm + bias


if __name__ == "__main__":
    key = jax.random.PRNGKey(0)
    N, C, H, W = 2, 4, 16, 16
    x = jax.random.normal(key, (N, C, H, W), jnp.float32) * 2.0 + 0.5

    bn = MyBatchnorm2dPallas(num_features=C, momentum=0.1)
    y = jax.block_until_ready(bn(x))

    y_ref = _reference(x, bn.weight, bn.bias)
    assert y.shape == (N, C, H, W)
    assert jnp.allclose(y, y_ref, atol=1e-4, rtol=1e-4), "output mismatch"

    # Running-statistics check (one training step, momentum=0.1).
    mean_ref = x.mean(axis=(0, 2, 3)).reshape(1, C, 1, 1)
    assert jnp.allclose(bn.running_mean, 0.1 * mean_ref, atol=1e-5, rtol=1e-5), \
        "running_mean mismatch"

    # Second check: force small spatial tiles so the two-pass accumulation
    # spans multiple grid steps (exercises the tiled/pipelined path).
    N2, C2, H2, W2 = 2, 8, 16, 32
    x2 = jax.random.normal(jax.random.PRNGKey(1),
                           (N2, C2, H2, W2), jnp.float32) * 3.0 - 1.0
    w2 = jnp.ones((1, C2, 1, 1), jnp.float32)
    b2 = jnp.zeros((1, C2, 1, 1), jnp.float32)
    y23, _, _ = _bn_pallas(x2.reshape(N2, C2, H2 * W2),
                           w2.reshape(1, C2, 1), b2.reshape(1, C2, 1),
                           eps=1e-5,
                           max_block_bytes=N2 * C2 * 128 * 4)  # -> TL=128, 4 tiles
    y2 = jax.block_until_ready(y23).reshape(N2, C2, H2, W2)
    y2_ref = _reference(x2, w2, b2)
    assert jnp.allclose(y2, y2_ref, atol=1e-4, rtol=1e-4), "tiled-path mismatch"

    print("KERNEL_OK")
</pallas_src>

<mosaic_0001>
module attributes {stable_mosaic.version = 11 : i64} {
  func.func @_bn_kernel(%arg0: i32, %arg1: i32, %arg2: i32, %arg3: memref<2x4x256xf32, #tpu.memory_space<vmem>>, %arg4: memref<1x4x1xf32, #tpu.memory_space<vmem>>, %arg5: memref<1x4x1xf32, #tpu.memory_space<vmem>>, %arg6: memref<2x4x256xf32, #tpu.memory_space<vmem>>, %arg7: memref<1x4x1xf32, #tpu.memory_space<vmem>>, %arg8: memref<1x4x1xf32, #tpu.memory_space<vmem>>, %arg9: memref<1x4x1xf32, #tpu.memory_space<vmem>>, %arg10: memref<1x4x1xf32, #tpu.memory_space<vmem>>, %arg11: memref<1x4x1xf32, #tpu.memory_space<vmem>>, %arg12: memref<1x4x1xf32, #tpu.memory_space<vmem>>) attributes {dimension_semantics = [#tpu.dimension_semantics<parallel>, #tpu.dimension_semantics<arbitrary>, #tpu.dimension_semantics<arbitrary>], iteration_bounds = array<i64: 1, 2, 1>, scalar_prefetch = 0 : i64, scratch_operands = 4 : i64, tpu.core_type = #tpu.core_type<tc>, window_params = [{transform_indices = @transform_0, window_bounds = array<i64: 2, 4, 256>}, {transform_indices = @transform_1, window_bounds = array<i64: 1, 4, 1>}, {transform_indices = @transform_2, window_bounds = array<i64: 1, 4, 1>}, {transform_indices = @transform_3, window_bounds = array<i64: 2, 4, 256>}, {transform_indices = @transform_4, window_bounds = array<i64: 1, 4, 1>}, {transform_indices = @transform_5, window_bounds = array<i64: 1, 4, 1>}]} {
    %c0_i32 = arith.constant 0 : i32
    %0 = arith.cmpi eq, %arg1, %c0_i32 : i32
    %1 = arith.extui %0 : i1 to i32
    %c0_i32_0 = arith.constant 0 : i32
    %2 = arith.cmpi ne, %1, %c0_i32_0 : i32
    scf.if %2 {
      %c0_i32_2 = arith.constant 0 : i32
      %6 = arith.cmpi eq, %arg2, %c0_i32_2 : i32
      %7 = arith.extui %6 : i1 to i32
      %c0_i32_3 = arith.constant 0 : i32
      %8 = arith.cmpi ne, %7, %c0_i32_3 : i32
      scf.if %8 {
        %cst_21 = arith.constant 0.000000e+00 : f32
        %24 = vector.broadcast %cst_21 : f32 to vector<1x4x1xf32>
        %c0_22 = arith.constant 0 : index
        %c0_23 = arith.constant 0 : index
        %c0_24 = arith.constant 0 : index
        %25 = vector.load %arg9[%c0_22, %c0_23, %c0_24] : memref<1x4x1xf32, #tpu.memory_space<vmem>>, vector<1x4x1xf32>
        tpu.vector_store %arg9[%c0_22, %c0_23, %c0_24], %24 {strides = array<i32>} : memref<1x4x1xf32, #tpu.memory_space<vmem>>, vector<1x4x1xf32>,
        %cst_25 = arith.constant 0.000000e+00 : f32
        %26 = vector.broadcast %cst_25 : f32 to vector<1x4x1xf32>
        %c0_26 = arith.constant 0 : index
        %c0_27 = arith.constant 0 : index
        %c0_28 = arith.constant 0 : index
        %27 = vector.load %arg10[%c0_26, %c0_27, %c0_28] : memref<1x4x1xf32, #tpu.memory_space<vmem>>, vector<1x4x1xf32>
        tpu.vector_store %arg10[%c0_26, %c0_27, %c0_28], %26 {strides = array<i32>} : memref<1x4x1xf32, #tpu.memory_space<vmem>>, vector<1x4x1xf32>,
      } else {
      }
      %c0 = arith.constant 0 : index
      %c0_4 = arith.constant 0 : index
      %c0_5 = arith.constant 0 : index
      %9 = vector.load %arg3[%c0, %c0_4, %c0_5] : memref<2x4x256xf32, #tpu.memory_space<vmem>>, vector<2x4x256xf32>
      %c0_6 = arith.constant 0 : index
      %c0_7 = arith.constant 0 : index
      %c0_8 = arith.constant 0 : index
      %10 = vector.load %arg9[%c0_6, %c0_7, %c0_8] : memref<1x4x1xf32, #tpu.memory_space<vmem>>, vector<1x4x1xf32>
      %cst = arith.constant dense<0.000000e+00> : vector<4xf32>
      %11 = vector.multi_reduction <add>, %9, %cst [0, 2] : vector<2x4x256xf32> to vector<4xf32>
      %12 = vector.shape_cast %11 : vector<4xf32> to vector<1x4x1xf32>
      %13 = arith.addf %10, %12 : vector<1x4x1xf32>
      %c0_9 = arith.constant 0 : index
      %c0_10 = arith.constant 0 : index
      %c0_11 = arith.constant 0 : index
      %14 = vector.load %arg9[%c0_9, %c0_10, %c0_11] : memref<1x4x1xf32, #tpu.memory_space<vmem>>, vector<1x4x1xf32>
      tpu.vector_store %arg9[%c0_9, %c0_10, %c0_11], %13 {strides = array<i32>} : memref<1x4x1xf32, #tpu.memory_space<vmem>>, vector<1x4x1xf32>,
      %c0_12 = arith.constant 0 : index
      %c0_13 = arith.constant 0 : index
      %c0_14 = arith.constant 0 : index
      %15 = vector.load %arg10[%c0_12, %c0_13, %c0_14] : memref<1x4x1xf32, #tpu.memory_space<vmem>>, vector<1x4x1xf32>
      %16 = arith.mulf %9, %9 : vector<2x4x256xf32>
      %cst_15 = arith.constant dense<0.000000e+00> : vector<4xf32>
      %17 = vector.multi_reduction <add>, %16, %cst_15 [0, 2] : vector<2x4x256xf32> to vector<4xf32>
      %18 = vector.shape_cast %17 : vector<4xf32> to vector<1x4x1xf32>
      %19 = arith.addf %15, %18 : vector<1x4x1xf32>
      %c0_16 = arith.constant 0 : index
      %c0_17 = arith.constant 0 : index
      %c0_18 = arith.constant 0 : index
      %20 = vector.load %arg10[%c0_16, %c0_17, %c0_18] : memref<1x4x1xf32, #tpu.memory_space<vmem>>, vector<1x4x1xf32>
      tpu.vector_store %arg10[%c0_16, %c0_17, %c0_18], %19 {strides = array<i32>} : memref<1x4x1xf32, #tpu.memory_space<vmem>>, vector<1x4x1xf32>,
      %c0_i32_19 = arith.constant 0 : i32
      %21 = arith.cmpi eq, %arg2, %c0_i32_19 : i32
      %22 = arith.extui %21 : i1 to i32
      %c0_i32_20 = arith.constant 0 : i32
      %23 = arith.cmpi ne, %22, %c0_i32_20 : i32
      scf.if %23 {
        %c0_21 = arith.constant 0 : index
        %c0_22 = arith.constant 0 : index
        %c0_23 = arith.constant 0 : index
        %24 = vector.load %arg9[%c0_21, %c0_22, %c0_23] : memref<1x4x1xf32, #tpu.memory_space<vmem>>, vector<1x4x1xf32>
        %cst_24 = arith.constant 0.001953125 : f32
        %25 = vector.broadcast %cst_24 : f32 to vector<1x4x1xf32>
        %26 = arith.mulf %24, %25 : vector<1x4x1xf32>
        %c0_25 = arith.constant 0 : index
        %c0_26 = arith.constant 0 : index
        %c0_27 = arith.constant 0 : index
        %27 = vector.load %arg10[%c0_25, %c0_26, %c0_27] : memref<1x4x1xf32, #tpu.memory_space<vmem>>, vector<1x4x1xf32>
        %cst_28 = arith.constant 0.001953125 : f32
        %28 = vector.broadcast %cst_28 : f32 to vector<1x4x1xf32>
        %29 = arith.mulf %27, %28 : vector<1x4x1xf32>
        %30 = arith.mulf %26, %26 : vector<1x4x1xf32>
        %31 = arith.subf %29, %30 : vector<1x4x1xf32>
        %cst_29 = arith.constant 9.99999974E-6 : f32
        %32 = vector.broadcast %cst_29 : f32 to vector<1x4x1xf32>
        %33 = arith.addf %31, %32 : vector<1x4x1xf32>
        %34 = math.rsqrt %33 : vector<1x4x1xf32>
        %c0_30 = arith.constant 0 : index
        %c0_31 = arith.constant 0 : index
        %c0_32 = arith.constant 0 : index
        %35 = vector.load %arg4[%c0_30, %c0_31, %c0_32] : memref<1x4x1xf32, #tpu.memory_space<vmem>>, vector<1x4x1xf32>
        %36 = arith.mulf %35, %34 : vector<1x4x1xf32>
        %c0_33 = arith.constant 0 : index
        %c0_34 = arith.constant 0 : index
        %c0_35 = arith.constant 0 : index
        %37 = vector.load %arg5[%c0_33, %c0_34, %c0_35] : memref<1x4x1xf32, #tpu.memory_space<vmem>>, vector<1x4x1xf32>
        %38 = arith.mulf %26, %36 : vector<1x4x1xf32>
        %39 = arith.subf %37, %38 : vector<1x4x1xf32>
        %c0_36 = arith.constant 0 : index
        %c0_37 = arith.constant 0 : index
        %c0_38 = arith.constant 0 : index
        %40 = vector.load %arg7[%c0_36, %c0_37, %c0_38] : memref<1x4x1xf32, #tpu.memory_space<vmem>>, vector<1x4x1xf32>
        tpu.vector_store %arg7[%c0_36, %c0_37, %c0_38], %26 {strides = array<i32>} : memref<1x4x1xf32, #tpu.memory_space<vmem>>, vector<1x4x1xf32>,
        %c0_39 = arith.constant 0 : index
        %c0_40 = arith.constant 0 : index
        %c0_41 = arith.constant 0 : index
        %41 = vector.load %arg8[%c0_39, %c0_40, %c0_41] : memref<1x4x1xf32, #tpu.memory_space<vmem>>, vector<1x4x1xf32>
        tpu.vector_store %arg8[%c0_39, %c0_40, %c0_41], %31 {strides = array<i32>} : memref<1x4x1xf32, #tpu.memory_space<vmem>>, vector<1x4x1xf32>,
        %c0_42 = arith.constant 0 : index
        %c0_43 = arith.constant 0 : index
        %c0_44 = arith.constant 0 : index
        %42 = vector.load %arg11[%c0_42, %c0_43, %c0_44] : memref<1x4x1xf32, #tpu.memory_space<vmem>>, vector<1x4x1xf32>
        tpu.vector_store %arg11[%c0_42, %c0_43, %c0_44], %36 {strides = array<i32>} : memref<1x4x1xf32, #tpu.memory_space<vmem>>, vector<1x4x1xf32>,
        %c0_45 = arith.constant 0 : index
        %c0_46 = arith.constant 0 : index
        %c0_47 = arith.constant 0 : index
        %43 = vector.load %arg12[%c0_45, %c0_46, %c0_47] : memref<1x4x1xf32, #tpu.memory_space<vmem>>, vector<1x4x1xf32>
        tpu.vector_store %arg12[%c0_45, %c0_46, %c0_47], %39 {strides = array<i32>} : memref<1x4x1xf32, #tpu.memory_space<vmem>>, vector<1x4x1xf32>,
      } else {
      }
    } else {
    }
    %c1_i32 = arith.constant 1 : i32
    %3 = arith.cmpi eq, %arg1, %c1_i32 : i32
    %4 = arith.extui %3 : i1 to i32
    %c0_i32_1 = arith.constant 0 : i32
    %5 = arith.cmpi ne, %4, %c0_i32_1 : i32
    scf.if %5 {
      %c0 = arith.constant 0 : index
      %c0_2 = arith.constant 0 : index
      %c0_3 = arith.constant 0 : index
      %6 = vector.load %arg3[%c0, %c0_2, %c0_3] : memref<2x4x256xf32, #tpu.memory_space<vmem>>, vector<2x4x256xf32>
      %c0_4 = arith.constant 0 : index
      %c0_5 = arith.constant 0 : index
      %c0_6 = arith.constant 0 : index
      %7 = vector.load %arg11[%c0_4, %c0_5, %c0_6] : memref<1x4x1xf32, #tpu.memory_space<vmem>>, vector<1x4x1xf32>
      %8 = vector.broadcast %7 : vector<1x4x1xf32> to vector<2x4x256xf32>
      %9 = arith.mulf %6, %8 : vector<2x4x256xf32>
      %c0_7 = arith.constant 0 : index
      %c0_8 = arith.constant 0 : index
      %c0_9 = arith.constant 0 : index
      %10 = vector.load %arg12[%c0_7, %c0_8, %c0_9] : memref<1x4x1xf32, #tpu.memory_space<vmem>>, vector<1x4x1xf32>
      %11 = vector.broadcast %10 : vector<1x4x1xf32> to vector<2x4x256xf32>
      %12 = arith.addf %9, %11 : vector<2x4x256xf32>
      %c0_10 = arith.constant 0 : index
      %c0_11 = arith.constant 0 : index
      %c0_12 = arith.constant 0 : index
      %13 = vector.load %arg6[%c0_10, %c0_11, %c0_12] : memref<2x4x256xf32, #tpu.memory_space<vmem>>, vector<2x4x256xf32>
      tpu.vector_store %arg6[%c0_10, %c0_11, %c0_12], %12 {strides = array<i32>} : memref<2x4x256xf32, #tpu.memory_space<vmem>>, vector<2x4x256xf32>,
    } else {
    }
    return
  }
  func.func @transform_0(%arg0: i32, %arg1: i32, %arg2: i32) -> (i32, i32, i32) {
    %c0_i32 = arith.constant 0 : i32
    %c0_i32_0 = arith.constant 0 : i32
    return %c0_i32, %arg0, %arg2 : i32, i32, i32
  }
  func.func @transform_1(%arg0: i32, %arg1: i32, %arg2: i32) -> (i32, i32, i32) {
    %c0_i32 = arith.constant 0 : i32
    %c0_i32_0 = arith.constant 0 : i32
    %c0_i32_1 = arith.constant 0 : i32
    return %c0_i32, %arg0, %c0_i32_0 : i32, i32, i32
  }
  func.func @transform_2(%arg0: i32, %arg1: i32, %arg2: i32) -> (i32, i32, i32) {
    %c0_i32 = arith.constant 0 : i32
    %c0_i32_0 = arith.constant 0 : i32
    %c0_i32_1 = arith.constant 0 : i32
    return %c0_i32, %arg0, %c0_i32_0 : i32, i32, i32
  }
  func.func @transform_3(%arg0: i32, %arg1: i32, %arg2: i32) -> (i32, i32, i32) {
    %0 = arith.muli %arg2, %arg1 : i32
    %c0_i32 = arith.constant 0 : i32
    %c0_i32_0 = arith.constant 0 : i32
    return %c0_i32, %arg0, %0 : i32, i32, i32
  }
  func.func @transform_4(%arg0: i32, %arg1: i32, %arg2: i32) -> (i32, i32, i32) {
    %c0_i32 = arith.constant 0 : i32
    %c0_i32_0 = arith.constant 0 : i32
    %c0_i32_1 = arith.constant 0 : i32
    return %c0_i32, %arg0, %c0_i32_0 : i32, i32, i32
  }
  func.func @transform_5(%arg0: i32, %arg1: i32, %arg2: i32) -> (i32, i32, i32) {
    %c0_i32 = arith.constant 0 : i32
    %c0_i32_0 = arith.constant 0 : i32
    %c0_i32_1 = arith.constant 0 : i32
    return %c0_i32, %arg0, %c0_i32_0 : i32, i32, i32
  }
}

</mosaic_0001>

<llo_original>
// kernel: _bn_train_forward.1
$region0: #{_bn_train_forward.1}
  #allocation0 [shape = 'u32[]', space=smem, size = 0x4, offset = 0x4, fixed_abs, tag = 'smem constant byte address 0x4 - core index']
  #allocation1 [shape = 'u32[144,128]{1,0:T(1,128)}', space=vmem, size = 0x12000, scoped, tag = 'internal scratch']
  #allocation2 [shape = 'f32[1,4,1]{2,1,0:T(4,128)}', space=vmem, size = 0x800, scoped, tag = 'scratch operand']
  #allocation3 [shape = 'f32[1,4,1]{2,1,0:T(4,128)}', space=vmem, size = 0x800, scoped, tag = 'scratch operand']
  #allocation4 [shape = 'f32[1,4,1]{2,1,0:T(4,128)}', space=vmem, size = 0x800, scoped, tag = 'scratch operand']
  #allocation5 [shape = 'f32[1,4,1]{2,1,0:T(4,128)}', space=vmem, size = 0x800, scoped, tag = 'scratch operand']
  %s0 = inlined_call_operand.vmem [shape: f32[2,4,256], index: 0, kind: input, shape index: {}]
  %s1 = inlined_call_operand.vmem [shape: f32[1,4,1], index: 1, kind: input, shape index: {}]
  %s2 = inlined_call_operand.vmem [shape: f32[1,4,1], index: 2, kind: input, shape index: {}]
  %s3 = inlined_call_operand.vmem [shape: f32[2,4,256], index: 3, kind: output, shape index: {0}]
  %s4 = inlined_call_operand.vmem [shape: f32[1,4,1], index: 4, kind: output, shape index: {1}]
  %s5 = inlined_call_operand.vmem [shape: f32[1,4,1], index: 5, kind: output, shape index: {2}]
  %6 = xla_tuple %s3, %s4, %s5
  %s7 = sld [smem:[#allocation0]]
  $region77: #{_bn_train_forward.1} parent=0
    _
  %s9 = ssub.s32 1, %s7
  %s10 = scalar_select 0, %s9, %s7
  loop: start=0, step=1, limit=4
  $region2: #{_bn_train_forward.1} parent=0 // loop_pre_header
    _
  $region3: #{_bn_train_forward.1} parent=0 // loop_header
    %s12 = sphi 0, %s16
    %p13 = scmp.ge.s32.totalorder %s12, 4
    %s19 = sphi 0, %s38
    %s20 = sphi 0, %s34
    %s21 = sphi 0, %s30
    %s22 = sphi 0, %s19
    %s23 = sphi 0, %s20
    %s24 = sphi 0, %s21
    %s25 = sphi 0, %s22
    %s26 = sphi 0, %s23
    %s27 = sphi 0, %s24
    %s43 = sphi 0, %s45
    %s46 = sphi 0, %s43
    %s47 = sphi 0, %s46
    %s63 = sphi 0, %s47
    %s69 = sphi 0, %s71
    %s72 = sphi 0, %s69
    %s73 = sphi 0, %s72
    %s89 = sphi 0, %s73
    %s95 = sphi 0, %s97
    %s98 = sphi 0, %s95
    %s99 = sphi 0, %s98
    %s115 = sphi 0, %s99
    %s125 = sphi 0, %s127
    %s128 = sphi 0, %s125
    %s129 = sphi 0, %s128
    %s145 = sphi 0, %s129
    %s151 = sphi 0, %s153
    %s154 = sphi 0, %s151
    %s155 = sphi 0, %s154
    %s171 = sphi 0, %s155
    %s177 = sphi 0, %s179
    %s180 = sphi 0, %s177
    %s181 = sphi 0, %s180
    %s197 = sphi 0, %s181
  $region4: #{_bn_train_forward.1} parent=0 // loop_header_branch
    %15 = sbr.rel (%p13) target = $region8
  $region5: #{_bn_train_forward.1} parent=0 // loop_body
    %s17 = ssub.s32 %s12, 1
    %s18 = ssub.s32 %s12, 2
    %s28 = sadd.s32 1, %s21
    %p29 = scmp.ge.s32.totalorder %s28, 1
    %s30 = scalar_select %p29, 0, %s28
    %s31 = sadd.s32 1, %s20
    %s32 = scalar_select %p29, %s31, %s20
    %p33 = scmp.ge.s32.totalorder %s32, 2
    %s34 = scalar_select %p33, 0, %s32
    %s35 = sadd.s32 1, %s19
    %s36 = scalar_select %p33, %s35, %s19
    %p37 = scmp.ge.s32.totalorder %s36, 1
    %s38 = scalar_select %p37, 0, %s36
    %s39 = ssub.s32 %s19, %s38
    %s40 = ssub.s32 %s21, %s30
    %s41 = sor.u32 %s39, %s40
    %p42 = scmp.eq.s32.totalorder %s41, 0
    %s44 = sadd.s32 %s43, 1
    %s45 = scalar_select %p42, %s43, %s44
    %p48 = pneg %p42
    %p49 = scmp.eq.s32.totalorder %s12, 1
    %p50 = por %p48, %p49
    %p51 = scmp.ne.s32.totalorder %s43, %s46
    %p52 = scmp.eq.s32.totalorder %s12, 0
    %p53 = por %p51, %p52
    %p54 = scmp.ne.s32.totalorder %s43, %s46
    %p55 = scmp.eq.s32.totalorder %s17, 1
    %p56 = por %p54, %p55
    %p57 = scmp.ne.s32.totalorder %s46, %s47
    %p58 = scmp.eq.s32.totalorder %s17, 0
    %p59 = por %p57, %p58
    %p60 = scmp.ne.s32.totalorder %s46, %s47
    %p61 = scmp.eq.s32.totalorder %s18, 1
    %p62 = por %p60, %p61
    %p64 = scmp.ne.s32.totalorder %s47, %s63
    %p65 = scmp.eq.s32.totalorder %s18, 0
    %p66 = por %p64, %p65
    %s67 = ssub.s32 %s19, %s38
    %p68 = scmp.eq.s32.totalorder %s67, 0
    %s70 = sadd.s32 %s69, 1
    %s71 = scalar_select %p68, %s69, %s70
    %p74 = pneg %p68
    %p75 = scmp.eq.s32.totalorder %s12, 1
    %p76 = por %p74, %p75
    %p77 = scmp.ne.s32.totalorder %s69, %s72
    %p78 = scmp.eq.s32.totalorder %s12, 0
    %p79 = por %p77, %p78
    %p80 = scmp.ne.s32.totalorder %s69, %s72
    %p81 = scmp.eq.s32.totalorder %s17, 1
    %p82 = por %p80, %p81
    %p83 = scmp.ne.s32.totalorder %s72, %s73
    %p84 = scmp.eq.s32.totalorder %s17, 0
    %p85 = por %p83, %p84
    %p86 = scmp.ne.s32.totalorder %s72, %s73
    %p87 = scmp.eq.s32.totalorder %s18, 1
    %p88 = por %p86, %p87
    %p90 = scmp.ne.s32.totalorder %s73, %s89
    %p91 = scmp.eq.s32.totalorder %s18, 0
    %p92 = por %p90, %p91
    %s93 = ssub.s32 %s19, %s38
    %p94 = scmp.eq.s32.totalorder %s93, 0
    %s96 = sadd.s32 %s95, 1
    %s97 = scalar_select %p94, %s95, %s96
    %p100 = pneg %p94
    %p101 = scmp.eq.s32.totalorder %s12, 1
    %p102 = por %p100, %p101
    %p103 = scmp.ne.s32.totalorder %s95, %s98
    %p104 = scmp.eq.s32.totalorder %s12, 0
    %p105 = por %p103, %p104
    %p106 = scmp.ne.s32.totalorder %s95, %s98
    %p107 = scmp.eq.s32.totalorder %s17, 1
    %p108 = por %p106, %p107
    %p109 = scmp.ne.s32.totalorder %s98, %s99
    %p110 = scmp.eq.s32.totalorder %s17, 0
    %p111 = por %p109, %p110
    %p112 = scmp.ne.s32.totalorder %s98, %s99
    %p113 = scmp.eq.s32.totalorder %s18, 1
    %p114 = por %p112, %p113
    %p116 = scmp.ne.s32.totalorder %s99, %s115
    %p117 = scmp.eq.s32.totalorder %s18, 0
    %p118 = por %p116, %p117
    %s119 = smul.u32 %s21, %s20
    %s120 = smul.u32 %s30, %s34
    %s121 = ssub.s32 %s19, %s38
    %s122 = ssub.s32 %s119, %s120
    %s123 = sor.u32 %s121, %s122
    %p124 = scmp.eq.s32.totalorder %s123, 0
    %s126 = sadd.s32 %s125, 1
    %s127 = scalar_select %p124, %s125, %s126
    %p130 = pneg %p124
    %p131 = scmp.eq.s32.totalorder %s12, 1
    %p132 = por %p130, %p131
    %p133 = scmp.ne.s32.totalorder %s125, %s128
    %p134 = scmp.eq.s32.totalorder %s12, 0
    %p135 = por %p133, %p134
    %p136 = scmp.ne.s32.totalorder %s125, %s128
    %p137 = scmp.eq.s32.totalorder %s17, 1
    %p138 = por %p136, %p137
    %p139 = scmp.ne.s32.totalorder %s128, %s129
    %p140 = scmp.eq.s32.totalorder %s17, 0
    %p141 = por %p139, %p140
    %p142 = scmp.ne.s32.totalorder %s128, %s129
    %p143 = scmp.eq.s32.totalorder %s18, 1
    %p144 = por %p142, %p143
    %p146 = scmp.ne.s32.totalorder %s129, %s145
    %p147 = scmp.eq.s32.totalorder %s18, 0
    %p148 = por %p146, %p147
    %s149 = ssub.s32 %s19, %s38
    %p150 = scmp.eq.s32.totalorder %s149, 0
    %s152 = sadd.s32 %s151, 1
    %s153 = scalar_select %p150, %s151, %s152
    %p156 = pneg %p150
    %p157 = scmp.eq.s32.totalorder %s12, 1
    %p158 = por %p156, %p157
    %p159 = scmp.ne.s32.totalorder %s151, %s154
    %p160 = scmp.eq.s32.totalorder %s12, 0
    %p161 = por %p159, %p160
    %p162 = scmp.ne.s32.totalorder %s151, %s154
    %p163 = scmp.eq.s32.totalorder %s17, 1
    %p164 = por %p162, %p163
    %p165 = scmp.ne.s32.totalorder %s154, %s155
    %p166 = scmp.eq.s32.totalorder %s17, 0
    %p167 = por %p165, %p166
    %p168 = scmp.ne.s32.totalorder %s154, %s155
    %p169 = scmp.eq.s32.totalorder %s18, 1
    %p170 = por %p168, %p169
    %p172 = scmp.ne.s32.totalorder %s155, %s171
    %p173 = scmp.eq.s32.totalorder %s18, 0
    %p174 = por %p172, %p173
    %s175 = ssub.s32 %s19, %s38
    %p176 = scmp.eq.s32.totalorder %s175, 0
    %s178 = sadd.s32 %s177, 1
    %s179 = scalar_select %p176, %s177, %s178
    %p182 = pneg %p176
    %p183 = scmp.eq.s32.totalorder %s12, 1
    %p184 = por %p182, %p183
    %p185 = scmp.ne.s32.totalorder %s177, %s180
    %p186 = scmp.eq.s32.totalorder %s12, 0
    %p187 = por %p185, %p186
    %p188 = scmp.ne.s32.totalorder %s177, %s180
    %p189 = scmp.eq.s32.totalorder %s17, 1
    %p190 = por %p188, %p189
    %p191 = scmp.ne.s32.totalorder %s180, %s181
    %p192 = scmp.eq.s32.totalorder %s17, 0
    %p193 = por %p191, %p192
    %p194 = scmp.ne.s32.totalorder %s180, %s181
    %p195 = scmp.eq.s32.totalorder %s18, 1
    %p196 = por %p194, %p195
    %p198 = scmp.ne.s32.totalorder %s181, %s197
    %p199 = scmp.eq.s32.totalorder %s18, 0
    %p200 = por %p198, %p199
    %p201 = scmp.le.s32.totalorder 1, %s12
    %p202 = scmp.lt.s32.totalorder %s12, 3
    %p203 = pnand %p201, %p202
    %p204 = pneg %p203
    // Predicated region
    $region9: #{_bn_train_forward.1} parent=5 // pred_check
      _
    $region10: #{_bn_train_forward.1} parent=5 // pred_check_branch
      %206 = sbr.rel (%p203) target = $region12
    $region11: #{_bn_train_forward.1} parent=5 // pred_region
      %s207 = ssub.s32 %s12, 1
      // Predicated region
      $region13: #{_bn_train_forward.1} parent=11 // pred_check
        %p208 = pneg %p59
      $region14: #{_bn_train_forward.1} parent=11 // pred_check_branch
        %210 = sbr.rel (%p208) target = $region16
      $region15: #{_bn_train_forward.1} parent=11 // pred_region
        %s211 = smul.u32 2, %s24
        %p212 = scmp.lt.s32.totalorder %s22, 0
        %s213 = scalar_select %p212, %s22, 0
        %p214 = scmp.lt.s32.totalorder %s211, 1
        %s215 = scalar_select %p214, %s211, 1
        %s216 = smul.addr %s213, 2
        %s217 = sadd.s32 %s215, %s216
        %s218 = smul.addr %s217, 4
        %s219 = scalar_lea.vmem %s0, %s218
        %s220 = smul.u32 2, %s24
      $region16: #{_bn_train_forward.1} parent=11 // pred_fallthru
        _
      // Predicated region
      $region17: #{_bn_train_forward.1} parent=11 // pred_check
        %p221 = pneg %p85
      $region18: #{_bn_train_forward.1} parent=11 // pred_check_branch
        %223 = sbr.rel (%p221) target = $region20
      $region19: #{_bn_train_forward.1} parent=11 // pred_region
        %p224 = scmp.lt.s32.totalorder %s22, 0
        %s225 = scalar_select %p224, %s22, 0
        %s226 = smul.addr %s225, 4
        %s227 = scalar_lea.vmem %s1, %s226
      $region20: #{_bn_train_forward.1} parent=11 // pred_fallthru
        _
      // Predicated region
      $region21: #{_bn_train_forward.1} parent=11 // pred_check
        %p228 = pneg %p111
      $region22: #{_bn_train_forward.1} parent=11 // pred_check_branch
        %230 = sbr.rel (%p228) target = $region24
      $region23: #{_bn_train_forward.1} parent=11 // pred_region
        %p231 = scmp.lt.s32.totalorder %s22, 0
        %s232 = scalar_select %p231, %s22, 0
        %s233 = smul.addr %s232, 4
        %s234 = scalar_lea.vmem %s2, %s233
      $region24: #{_bn_train_forward.1} parent=11 // pred_fallthru
        _
    $region12: #{_bn_train_forward.1} parent=5 // pred_fallthru
      _
    %p235 = scmp.lt.s32.totalorder %s12, 2
    // Predicated region
    $region25: #{_bn_train_forward.1} parent=5 // pred_check
      %p236 = pneg %p235
    $region26: #{_bn_train_forward.1} parent=5 // pred_check_branch
      %238 = sbr.rel (%p236) target = $region28
    $region27: #{_bn_train_forward.1} parent=5 // pred_region
      _
    $region28: #{_bn_train_forward.1} parent=5 // pred_fallthru
      _
    %p239 = scmp.le.s32.totalorder 1, %s12
    %p240 = scmp.lt.s32.totalorder %s12, 3
    %p241 = pnand %p239, %p240
    %p242 = pneg %p241
    // Predicated region
    $region29: #{_bn_train_forward.1} parent=5 // pred_check
      _
    $region30: #{_bn_train_forward.1} parent=5 // pred_check_branch
      %244 = sbr.rel (%p241) target = $region32
    $region31: #{_bn_train_forward.1} parent=5 // pred_region
      %s245 = ssub.s32 %s12, 1
      %s246 = smul.u32 2, %s24
      %p247 = scmp.lt.s32.totalorder %s22, 0
      %s248 = scalar_select %p247, %s22, 0
      %p249 = scmp.lt.s32.totalorder %s246, 1
      %s250 = scalar_select %p249, %s246, 1
      %s251 = smul.addr %s248, 2
      %s252 = sadd.s32 %s250, %s251
      %s253 = smul.addr %s252, 4
      %s254 = scalar_lea.vmem %s0, %s253
      %p255 = pneg %p59
      %p256 = pneg %p56
      %p257 = scmp.lt.s32.totalorder %s22, 0
      %s258 = scalar_select %p257, %s22, 0
      %s259 = smul.addr %s258, 4
      %s260 = scalar_lea.vmem %s1, %s259
      %p261 = pneg %p85
      %p262 = pneg %p82
      %p263 = scmp.lt.s32.totalorder %s22, 0
      %s264 = scalar_select %p263, %s22, 0
      %s265 = smul.addr %s264, 4
      %s266 = scalar_lea.vmem %s2, %s265
      %p267 = pneg %p111
      %p268 = pneg %p108
      %p269 = pneg %p141
      %p270 = pneg %p138
      %s271 = smul.u32 %s24, %s23
      %s272 = smul.u32 2, %s271
      %p273 = scmp.lt.s32.totalorder %s22, 0
      %s274 = scalar_select %p273, %s22, 0
      %p275 = scmp.lt.s32.totalorder %s272, 1
      %s276 = scalar_select %p275, %s272, 1
      %s277 = smul.addr %s274, 2
      %s278 = sadd.s32 %s276, %s277
      %s279 = smul.addr %s278, 4
      %s280 = scalar_lea.vmem %s3, %s279
      %p281 = pneg %p167
      %p282 = pneg %p164
      %p283 = scmp.lt.s32.totalorder %s22, 0
      %s284 = scalar_select %p283, %s22, 0
      %s285 = smul.addr %s284, 4
      %s286 = scalar_lea.vmem %s4, %s285
      %p287 = pneg %p193
      %p288 = pneg %p190
      %p289 = scmp.lt.s32.totalorder %s22, 0
      %s290 = scalar_select %p289, %s22, 0
      %s291 = smul.addr %s290, 4
      %s292 = scalar_lea.vmem %s5, %s291
      %s293 = smul.u32 2, %s24
      %p294 = scmp.lt.s32.totalorder %s22, 0
      %s295 = scalar_select %p294, %s22, 0
      %p296 = scmp.lt.s32.totalorder %s293, 1
      %s297 = scalar_select %p296, %s293, 1
      %s298 = smul.addr %s295, 2
      %s299 = sadd.s32 %s297, %s298
      %s300 = smul.addr %s299, 4
      %s301 = scalar_lea.vmem %s0, %s300
      %s302 = smul.u32 2, %s24
      %p303 = scmp.lt.s32.totalorder %s22, 0
      %s304 = scalar_select %p303, %s22, 0
      %s305 = smul.addr %s304, 4
      %s306 = scalar_lea.vmem %s1, %s305
      %p307 = scmp.lt.s32.totalorder %s22, 0
      %s308 = scalar_select %p307, %s22, 0
      %s309 = smul.addr %s308, 4
      %s310 = scalar_lea.vmem %s2, %s309
      %s311 = smul.u32 %s24, %s23
      %s312 = smul.u32 2, %s311
      %p313 = scmp.lt.s32.totalorder %s22, 0
      %s314 = scalar_select %p313, %s22, 0
      %p315 = scmp.lt.s32.totalorder %s312, 1
      %s316 = scalar_select %p315, %s312, 1
      %s317 = smul.addr %s314, 2
      %s318 = sadd.s32 %s316, %s317
      %s319 = smul.addr %s318, 4
      %s320 = scalar_lea.vmem %s3, %s319
      %s321 = smul.u32 %s24, %s23
      %s322 = smul.u32 2, %s321
      %p323 = scmp.lt.s32.totalorder %s22, 0
      %s324 = scalar_select %p323, %s22, 0
      %s325 = smul.addr %s324, 4
      %s326 = scalar_lea.vmem %s4, %s325
      %p327 = scmp.lt.s32.totalorder %s22, 0
      %s328 = scalar_select %p327, %s22, 0
      %s329 = smul.addr %s328, 4
      %s330 = scalar_lea.vmem %s5, %s329
      %p331 = scmp.eq.s32.totalorder %s23, 0
      // Predicated region
      $region33: #{_bn_train_forward.1} parent=31 // pred_check
        %p332 = pneg %p331
      $region34: #{_bn_train_forward.1} parent=31 // pred_check_branch
        %334 = sbr.rel (%p332) target = $region36
      $region35: #{_bn_train_forward.1} parent=31 // pred_region
        %p335 = scmp.eq.s32.totalorder %s24, 0
        // Predicated region
        $region37: #{_bn_train_forward.1} parent=35 // pred_check
          %p336 = pneg %p335
        $region38: #{_bn_train_forward.1} parent=35 // pred_check_branch
          %338 = sbr.rel (%p336) target = $region40
        $region39: #{_bn_train_forward.1} parent=35 // pred_region
          %vm339 = vcmask 3072
          %340 = vst.msk [vmem:[#allocation2] sm:$0xf] %vm339, 0.0
          %341 = vst.msk [vmem:[#allocation3] sm:$0xf] %vm339, 0.0
        $region40: #{_bn_train_forward.1} parent=35 // pred_fallthru
          _
        %v342 = vld [vmem:[%s301] sm:$0xff]
        %v343 = vld [vmem:[%s301 + $0x8] sm:$0xff]
        %v344 = vld [vmem:[#allocation2] sm:$0xf]
        %v347 = vcombine.high %v342, %v342
        %v348 = vcombine.high %v343, %v343
        %vm351 = vcmask 1043456
        %v352 = vsel %vm351, %v342, 0.0
        %v353 = vsel %vm351, %v347, 0.0
        %v354 = vadd.f32 %v352, %v353
        %v355 = vsel %vm351, %v343, 0.0
        %v356 = vadd.f32 %v354, %v355
        %v357 = vsel %vm351, %v348, 0.0
        %v358 = vadd.f32 %v356, %v357
        %359 = vadd.xlane.f32.xlu0 %v358
        %v360 = vpop.xlane.xlu0 %359
        %v361 = vadd.f32 %v344, %v360
        %vm362 = vcmask 3072
        %363 = vst.msk [vmem:[#allocation2] sm:$0xf] %vm362, %v361
        %v364 = vld [vmem:[#allocation3] sm:$0xf]
        %v365 = vmul.f32 %v342, %v342
        %v366 = vmul.f32 %v343, %v343
        %v369 = vcombine.high %v365, %v365
        %v370 = vcombine.high %v366, %v366
        %v373 = vsel %vm351, %v365, 0.0
        %v374 = vsel %vm351, %v369, 0.0
        %v375 = vadd.f32 %v373, %v374
        %v376 = vsel %vm351, %v366, 0.0
        %v377 = vadd.f32 %v375, %v376
        %v378 = vsel %vm351, %v370, 0.0
        %v379 = vadd.f32 %v377, %v378
        %380 = vadd.xlane.f32.xlu0 %v379
        %v381 = vpop.xlane.xlu0 %380
        %v382 = vadd.f32 %v364, %v381
        %383 = vst.msk [vmem:[#allocation3] sm:$0xf] %vm362, %v382
        // Predicated region
        $region41: #{_bn_train_forward.1} parent=35 // pred_check
          %p384 = pneg %p335
        $region42: #{_bn_train_forward.1} parent=35 // pred_check_branch
          %386 = sbr.rel (%p384) target = $region44
        $region43: #{_bn_train_forward.1} parent=35 // pred_region
          %v387 = vld [vmem:[#allocation2] sm:$0xf]
          %v388 = vmul.f32 %v387, 0.001953125
          %v389 = vld [vmem:[#allocation3] sm:$0xf]
          %v390 = vmul.f32 %v389, 0.001953125
          %v391 = vmul.f32 %v388, %v388
          %v392 = vsub.f32 %v390, %v391
          %v393 = vadd.f32 %v392, 1e-05
          %v394 = vrsqrt.pop %v393
          %v395 = vld [vmem:[%s306] sm:$0xf]
          %v396 = vmul.f32 %v395, %v394
          %v397 = vld [vmem:[%s310] sm:$0xf]
          %v398 = vmul.f32 %v388, %v396
          %v399 = vsub.f32 %v397, %v398
          %400 = vst.msk [vmem:[%s326] sm:$0xf] %vm362, %v388
          %401 = vst.msk [vmem:[%s330] sm:$0xf] %vm362, %v392
          %402 = vst.msk [vmem:[#allocation4] sm:$0xf] %vm362, %v396
          %403 = vst.msk [vmem:[#allocation5] sm:$0xf] %vm362, %v399
        $region44: #{_bn_train_forward.1} parent=35 // pred_fallthru
          _
      $region36: #{_bn_train_forward.1} parent=31 // pred_fallthru
        _
      %p404 = scmp.eq.s32.totalorder %s23, 1
      // Predicated region
      $region45: #{_bn_train_forward.1} parent=31 // pred_check
        %p405 = pneg %p404
      $region46: #{_bn_train_forward.1} parent=31 // pred_check_branch
        %407 = sbr.rel (%p405) target = $region48
      $region47: #{_bn_train_forward.1} parent=31 // pred_region
        %v408 = vld [vmem:[%s301] sm:$0xff]
        %v409 = vld [vmem:[%s301 + $0x8] sm:$0xff]
        %v410 = vld [vmem:[#allocation4] sm:$0xf]
        %412 = vset.pattern.permute.xlu0 0
        %413 = vperm.xlu0 %412, %v410
        %v414 = vpop.permute.xlu0 %413
        %v416 = vunpack.c.l.s4 839922192
        %v417 = vunpack.c.0.s8 %v416
        %v418 = vlaneseq
        %v419 = vshrl.u32 %v418, 7
        %v420 = vsub.s32 %v417, %v419
        %v421 = vrot.slane %v414, %v420
        %v423 = vmul.f32 %v408, %v421
        %v424 = vmul.f32 %v409, %v421
        %v425 = vld [vmem:[#allocation5] sm:$0xf]
        %427 = vset.pattern.permute.xlu0 0
        %428 = vperm.xlu0 %427, %v425
        %v429 = vpop.permute.xlu0 %428
        %v431 = vunpack.c.l.s4 839922192
        %v432 = vunpack.c.0.s8 %v431
        %v433 = vlaneseq
        %v434 = vshrl.u32 %v433, 7
        %v435 = vsub.s32 %v432, %v434
        %v436 = vrot.slane %v429, %v435
        %v438 = vadd.f32 %v423, %v436
        %v439 = vadd.f32 %v424, %v436
        %440 = vst [vmem:[%s320] sm:$0xff] %v438
        %441 = vst [vmem:[%s320 + $0x8] sm:$0xff] %v439
      $region48: #{_bn_train_forward.1} parent=31 // pred_fallthru
        _
      %s442 = smul.u32 %s24, %s23
      %s443 = smul.u32 2, %s442
      %p444 = scmp.lt.s32.totalorder %s22, 0
      %s445 = scalar_select %p444, %s22, 0
      %p446 = scmp.lt.s32.totalorder %s443, 1
      %s447 = scalar_select %p446, %s443, 1
      %s448 = smul.addr %s445, 2
      %s449 = sadd.s32 %s447, %s448
      %s450 = smul.addr %s449, 4
      %s451 = scalar_lea.vmem %s3, %s450
      %p452 = scmp.lt.s32.totalorder %s22, 0
      %s453 = scalar_select %p452, %s22, 0
      %s454 = smul.addr %s453, 4
      %s455 = scalar_lea.vmem %s4, %s454
      %p456 = scmp.lt.s32.totalorder %s22, 0
      %s457 = scalar_select %p456, %s22, 0
      %s458 = smul.addr %s457, 4
      %s459 = scalar_lea.vmem %s5, %s458
      // Predicated region
      $region49: #{_bn_train_forward.1} parent=31 // pred_check
        %p460 = pneg %p138
      $region50: #{_bn_train_forward.1} parent=31 // pred_check_branch
        %462 = sbr.rel (%p460) target = $region52
      $region51: #{_bn_train_forward.1} parent=31 // pred_region
        %s463 = smul.u32 %s24, %s23
        %s464 = smul.u32 2, %s463
      $region52: #{_bn_train_forward.1} parent=31 // pred_fallthru
        _
      // Predicated region
      $region53: #{_bn_train_forward.1} parent=31 // pred_check
        %p465 = pneg %p164
      $region54: #{_bn_train_forward.1} parent=31 // pred_check_branch
        %467 = sbr.rel (%p465) target = $region56
      $region55: #{_bn_train_forward.1} parent=31 // pred_region
        _
      $region56: #{_bn_train_forward.1} parent=31 // pred_fallthru
        _
      // Predicated region
      $region57: #{_bn_train_forward.1} parent=31 // pred_check
        %p468 = pneg %p190
      $region58: #{_bn_train_forward.1} parent=31 // pred_check_branch
        %470 = sbr.rel (%p468) target = $region60
      $region59: #{_bn_train_forward.1} parent=31 // pred_region
        _
      $region60: #{_bn_train_forward.1} parent=31 // pred_fallthru
        _
      // Predicated region
      $region61: #{_bn_train_forward.1} parent=31 // pred_check
        %p471 = pneg %p164
      $region62: #{_bn_train_forward.1} parent=31 // pred_check_branch
        %473 = sbr.rel (%p471) target = $region64
      $region63: #{_bn_train_forward.1} parent=31 // pred_region
        %p474 = scmp.lt.s32.totalorder %s22, 0
        %s475 = scalar_select %p474, %s22, 0
        %s476 = smul.addr %s475, 4
        %s477 = scalar_lea.vmem %s4, %s476
      $region64: #{_bn_train_forward.1} parent=31 // pred_fallthru
        _
      // Predicated region
      $region65: #{_bn_train_forward.1} parent=31 // pred_check
        %p478 = pneg %p190
      $region66: #{_bn_train_forward.1} parent=31 // pred_check_branch
        %480 = sbr.rel (%p478) target = $region68
      $region67: #{_bn_train_forward.1} parent=31 // pred_region
        %p481 = scmp.lt.s32.totalorder %s22, 0
        %s482 = scalar_select %p481, %s22, 0
        %s483 = smul.addr %s482, 4
        %s484 = scalar_lea.vmem %s5, %s483
      $region68: #{_bn_train_forward.1} parent=31 // pred_fallthru
        _
    $region32: #{_bn_train_forward.1} parent=5 // pred_fallthru
      _
    %p485 = scmp.le.s32.totalorder 2, %s12
    // Predicated region
    $region69: #{_bn_train_forward.1} parent=5 // pred_check
      %p486 = pneg %p485
    $region70: #{_bn_train_forward.1} parent=5 // pred_check_branch
      %488 = sbr.rel (%p486) target = $region72
    $region71: #{_bn_train_forward.1} parent=5 // pred_region
      %s489 = ssub.s32 %s12, 2
      // Predicated region
      $region73: #{_bn_train_forward.1} parent=71 // pred_check
        %p490 = pneg %p144
      $region74: #{_bn_train_forward.1} parent=71 // pred_check_branch
        %492 = sbr.rel (%p490) target = $region76
      $region75: #{_bn_train_forward.1} parent=71 // pred_region
        %s493 = smul.u32 %s27, %s26
        %s494 = smul.u32 2, %s493
        %p495 = scmp.lt.s32.totalorder %s25, 0
        %s496 = scalar_select %p495, %s25, 0
        %p497 = scmp.lt.s32.totalorder %s494, 1
        %s498 = scalar_select %p497, %s494, 1
        %s499 = smul.addr %s496, 2
        %s500 = sadd.s32 %s498, %s499
        %s501 = smul.addr %s500, 4
        %s502 = scalar_lea.vmem %s3, %s501
      $region76: #{_bn_train_forward.1} parent=71 // pred_fallthru
        _
    $region72: #{_bn_train_forward.1} parent=5 // pred_fallthru
      _
  $region6: #{_bn_train_forward.1} parent=0 // loop_footer
    %s16 = sadd.s32 1, %s12
  $region7: #{_bn_train_forward.1} parent=0 // loop_footer_branch
    %11 = sbr.rel target = $region3
  $region8: #{_bn_train_forward.1} parent=0 // loop_exit
    _

</llo_original>
